<compile_context>
chip_gen: v5e
topology: v5e:2x2
jax: 0.10.0
libtpu: 0.0.40
codegen_flags: <defaults>
</compile_context>

<pallas_src>
import functools

import jax
import jax.numpy as jnp
from jax.experimental import pallas as pl
from jax.experimental.pallas import tpu as pltpu


def _lsr_kernel(x_ref, t_ref, out_ref, *, e, num_classes, batch, block_b, reduction):
    i = pl.program_id(0)

    x = x_ref[...].astype(jnp.float32)          # (bb, C)  cast once after load
    t = t_ref[...]                              # (bb, 1)  int32 labels
    bb, C = x.shape

    # Numerically stable log-sum-exp per row.
    m = jnp.max(x, axis=1, keepdims=True)                               # (bb,1)
    lse = m + jnp.log(jnp.sum(jnp.exp(x - m), axis=1, keepdims=True))   # (bb,1)
    sum_x = jnp.sum(x, axis=1, keepdims=True)                           # (bb,1)

    # x[row, target[row]] via iota-compare select-sum (no dense one-hot).
    col = jax.lax.broadcasted_iota(jnp.int32, (bb, C), 1)
    x_t = jnp.sum(jnp.where(col == t, x, 0.0), axis=1, keepdims=True)   # (bb,1)

    # Closed-form label-smoothing loss; constants folded at trace time.
    smooth = e / (num_classes - 1)
    c_lse = jnp.float32(smooth * num_classes + (1.0 - e))
    c_sum = jnp.float32(smooth)
    c_tgt = jnp.float32(1.0 - e)
    row_loss = c_lse * lse - c_sum * sum_x - c_tgt * x_t                # (bb,1)

    if reduction == "none":
        # Per-row output; out-of-range rows of a padded last tile are simply
        # not written back by Pallas.
        out_ref[...] = row_loss
        return

    @pl.when(i == 0)
    def _init():
        out_ref[...] = jnp.zeros_like(out_ref)

    # Mask padded rows of the last tile (keeps mean unbiased; jnp.where also
    # shields the accumulator from any NaN garbage in padded logits).
    row_idx = i * block_b + jax.lax.broadcasted_iota(jnp.int32, (bb, 1), 0)
    row_loss = jnp.where(row_idx < batch, row_loss, 0.0)

    out_ref[...] += jnp.sum(row_loss, axis=0, keepdims=True)

    @pl.when(i == pl.num_programs(0) - 1)
    def _finalize():
        if reduction == "mean":
            out_ref[...] = out_ref[...] * jnp.float32(1.0 / batch)


def _pick_block_b(B, C, itemsize, target_bytes=8 * 1024 * 1024):
    """Rows per tile: ~8 MiB of logits per buffer, multiple of 8 (or full B)."""
    rows = max(8, target_bytes // max(1, C * itemsize))
    rows = (rows // 8) * 8
    if rows >= B:
        return B          # whole batch in one block (block == full dim is legal)
    return max(8, rows)


def lsr_loss(x: jax.Array, target: jax.Array, e: float = 0.1,
             reduction: str = "mean", block_b: int | None = None) -> jax.Array:
    """Label-smoothed cross entropy matching the PyTorch LSR module.

    x:      [B, C] logits (any float dtype; cast to f32 inside the kernel)
    target: [B]    int class indices
    """
    assert x.ndim == 2, "Only 2-D logits are implemented (matches PyTorch module)"
    assert x.shape[0] == target.shape[0], "batch size mismatch"
    if reduction not in ("mean", "sum", "none"):
        raise ValueError("reduction must be 'none', 'mean' or 'sum'")

    B, C = x.shape
    t2 = target.astype(jnp.int32).reshape(B, 1)

    if block_b is None:
        block_b = _pick_block_b(B, C, x.dtype.itemsize)
    grid = (pl.cdiv(B, block_b),)

    kernel = functools.partial(
        _lsr_kernel, e=float(e), num_classes=C, batch=B,
        block_b=block_b, reduction=reduction)

    if reduction == "none":
        out_shape = jax.ShapeDtypeStruct((B, 1), jnp.float32)
        out_spec = pl.BlockSpec((block_b, 1), lambda i: (i, 0))
    else:
        out_shape = jax.ShapeDtypeStruct((1, 1), jnp.float32)
        out_spec = pl.BlockSpec((1, 1), lambda i: (0, 0))   # resident accumulator

    out = pl.pallas_call(
        kernel,
        out_shape=out_shape,
        grid=grid,
        in_specs=[
            pl.BlockSpec((block_b, C), lambda i: (i, 0)),   # logits, native dtype
            pl.BlockSpec((block_b, 1), lambda i: (i, 0)),   # labels
        ],
        out_specs=out_spec,
        compiler_params=pltpu.CompilerParams(
            dimension_semantics=("arbitrary",),
            vmem_limit_bytes=48 * 1024 * 1024,
        ),
        cost_estimate=pl.CostEstimate(
            flops=7 * B * C,
            transcendentals=B * C + B,
            bytes_accessed=B * C * x.dtype.itemsize + B * 4 + 4,
        ),
    )(x, t2)

    if reduction == "none":
        return out[:, 0]
    return out[0, 0]


def _ref_loss(x, target, e=0.1, reduction="mean"):
    xf = x.astype(jnp.float32)
    B, C = xf.shape
    smooth = e / (C - 1)
    onehot = jax.nn.one_hot(target, C, dtype=jnp.float32) * (1.0 - e) + smooth
    logp = jax.nn.log_softmax(xf, axis=1)
    per_row = jnp.sum(-logp * onehot, axis=1)
    if reduction == "none":
        return per_row
    if reduction == "sum":
        return jnp.sum(per_row)
    return jnp.mean(per_row)


if __name__ == "__main__":
    root = jax.random.PRNGKey(0)
    k1, k2, k3, k4 = jax.random.split(root, 4)

    # Case 1: small f32 problem, single tile, mean reduction.
    B, C = 8, 32
    x = jax.random.normal(k1, (B, C), dtype=jnp.float32)
    t = jax.random.randint(k2, (B,), 0, C, dtype=jnp.int32)
    loss = lsr_loss(x, t, e=0.1)
    jax.block_until_ready(loss)
    assert jnp.allclose(loss, _ref_loss(x, t, 0.1), atol=1e-5, rtol=1e-5), \
        (loss, _ref_loss(x, t, 0.1))

    # Case 2: B not a multiple of the tile -> exercises row mask / accumulator.
    B2, C2 = 20, 32
    x2 = jax.random.normal(k3, (B2, C2), dtype=jnp.float32)
    t2 = jax.random.randint(k4, (B2,), 0, C2, dtype=jnp.int32)
    loss2 = lsr_loss(x2, t2, e=0.1, block_b=8)          # grid = 3, last tile padded
    jax.block_until_ready(loss2)
    assert jnp.allclose(loss2, _ref_loss(x2, t2, 0.1), atol=1e-5, rtol=1e-5), \
        (loss2, _ref_loss(x2, t2, 0.1))

    # Case 3: native bf16 logits (no wrapper upcast; cast happens inside kernel).
    xb = x2.astype(jnp.bfloat16)
    loss3 = lsr_loss(xb, t2, e=0.1, block_b=8)
    jax.block_until_ready(loss3)
    assert jnp.allclose(loss3, _ref_loss(xb, t2, 0.1), atol=1e-3, rtol=1e-3), \
        (loss3, _ref_loss(xb, t2, 0.1))

    # Case 4: 'sum' and 'none' reductions.
    loss4 = lsr_loss(x2, t2, e=0.1, reduction="sum", block_b=8)
    jax.block_until_ready(loss4)
    assert jnp.allclose(loss4, _ref_loss(x2, t2, 0.1, "sum"), atol=1e-4, rtol=1e-5)

    loss5 = lsr_loss(x2, t2, e=0.1, reduction="none", block_b=8)
    jax.block_until_ready(loss5)
    assert jnp.allclose(loss5, _ref_loss(x2, t2, 0.1, "none"), atol=1e-5, rtol=1e-5)

    print("KERNEL_OK")
</pallas_src>

<mosaic_0001>
module attributes {stable_mosaic.version = 11 : i64} {
  func.func @_lsr_kernel(%arg0: i32, %arg1: memref<8x32xf32, #tpu.memory_space<vmem>>, %arg2: memref<8x1xi32, #tpu.memory_space<vmem>>, %arg3: memref<1x1xf32, #tpu.memory_space<vmem>>) attributes {dimension_semantics = [#tpu.dimension_semantics<arbitrary>], iteration_bounds = array<i64: 1>, scalar_prefetch = 0 : i64, scratch_operands = 0 : i64, tpu.core_type = #tpu.core_type<tc>, window_params = [{transform_indices = @transform_0, window_bounds = array<i64: 8, 32>}, {transform_indices = @transform_1, window_bounds = array<i64: 8, 1>}, {pipeline_mode = #tpu.pipeline_mode<synchronous>, transform_indices = @transform_2, window_bounds = array<i64: 1, 1>}]} {
    %c0 = arith.constant 0 : index
    %c0_0 = arith.constant 0 : index
    %0 = vector.load %arg1[%c0, %c0_0] : memref<8x32xf32, #tpu.memory_space<vmem>>, vector<8x32xf32>
    %c0_1 = arith.constant 0 : index
    %c0_2 = arith.constant 0 : index
    %1 = vector.load %arg2[%c0_1, %c0_2] : memref<8x1xi32, #tpu.memory_space<vmem>>, vector<8x1xi32>
    %cst = arith.constant dense<0xFF800000> : vector<8xf32>
    %2 = vector.multi_reduction <maximumf>, %0, %cst [1] : vector<8x32xf32> to vector<8xf32>
    %3 = vector.shape_cast %2 : vector<8xf32> to vector<8x1xf32>
    %4 = vector.broadcast %3 : vector<8x1xf32> to vector<8x32xf32>
    %5 = arith.subf %0, %4 : vector<8x32xf32>
    %6 = math.exp %5 : vector<8x32xf32>
    %cst_3 = arith.constant dense<0.000000e+00> : vector<8xf32>
    %7 = vector.multi_reduction <add>, %6, %cst_3 [1] : vector<8x32xf32> to vector<8xf32>
    %8 = vector.shape_cast %7 : vector<8xf32> to vector<8x1xf32>
    %9 = math.log %8 : vector<8x1xf32>
    %10 = arith.addf %3, %9 : vector<8x1xf32>
    %cst_4 = arith.constant dense<0.000000e+00> : vector<8xf32>
    %11 = vector.multi_reduction <add>, %0, %cst_4 [1] : vector<8x32xf32> to vector<8xf32>
    %12 = vector.shape_cast %11 : vector<8xf32> to vector<8x1xf32>
    %13 = tpu.iota {dimensions = array<i32: 1>} : vector<8x32xi32>
    %14 = vector.broadcast %1 : vector<8x1xi32> to vector<8x32xi32>
    %15 = arith.cmpi eq, %13, %14 : vector<8x32xi32>
    %cst_5 = arith.constant 0.000000e+00 : f32
    %16 = vector.broadcast %cst_5 : f32 to vector<8x32xf32>
    %17 = arith.select %15, %0, %16 : vector<8x32xi1>, vector<8x32xf32>
    %cst_6 = arith.constant dense<0.000000e+00> : vector<8xf32>
    %18 = vector.multi_reduction <add>, %17, %cst_6 [1] : vector<8x32xf32> to vector<8xf32>
    %19 = vector.shape_cast %18 : vector<8xf32> to vector<8x1xf32>
    %cst_7 = arith.constant 1.0032258 : f32
    %20 = vector.broadcast %cst_7 : f32 to vector<8x1xf32>
    %21 = arith.mulf %20, %10 : vector<8x1xf32>
    %cst_8 = arith.constant 0.0032258064 : f32
    %22 = vector.broadcast %cst_8 : f32 to vector<8x1xf32>
    %23 = arith.mulf %22, %12 : vector<8x1xf32>
    %24 = arith.subf %21, %23 : vector<8x1xf32>
    %cst_9 = arith.constant 0.899999976 : f32
    %25 = vector.broadcast %cst_9 : f32 to vector<8x1xf32>
    %26 = arith.mulf %25, %19 : vector<8x1xf32>
    %27 = arith.subf %24, %26 : vector<8x1xf32>
    %c0_i32 = arith.constant 0 : i32
    %28 = arith.cmpi eq, %arg0, %c0_i32 : i32
    %29 = arith.extui %28 : i1 to i32
    %c0_i32_10 = arith.constant 0 : i32
    %30 = arith.cmpi ne, %29, %c0_i32_10 : i32
    scf.if %30 {
      %cst_20 = arith.constant 0.000000e+00 : f32
      %47 = vector.broadcast %cst_20 : f32 to vector<1x1xf32>
      %c0_21 = arith.constant 0 : index
      %c0_22 = arith.constant 0 : index
      %48 = vector.load %arg3[%c0_21, %c0_22] : memref<1x1xf32, #tpu.memory_space<vmem>>, vector<1x1xf32>
      tpu.vector_store %arg3[%c0_21, %c0_22], %47 {strides = array<i32>} : memref<1x1xf32, #tpu.memory_space<vmem>>, vector<1x1xf32>,
    } else {
    }
    %c8_i32 = arith.constant 8 : i32
    %31 = arith.muli %arg0, %c8_i32 : i32
    %32 = tpu.iota {dimensions = array<i32: 0>} : vector<8x1xi32>
    %33 = vector.broadcast %31 : i32 to vector<8x1xi32>
    %34 = arith.addi %33, %32 : vector<8x1xi32>
    %c8_i32_11 = arith.constant 8 : i32
    %35 = vector.broadcast %c8_i32_11 : i32 to vector<8x1xi32>
    %36 = arith.cmpi slt, %34, %35 : vector<8x1xi32>
    %cst_12 = arith.constant 0.000000e+00 : f32
    %37 = vector.broadcast %cst_12 : f32 to vector<8x1xf32>
    %38 = arith.select %36, %27, %37 : vector<8x1xi1>, vector<8x1xf32>
    %c0_13 = arith.constant 0 : index
    %c0_14 = arith.constant 0 : index
    %39 = vector.load %arg3[%c0_13, %c0_14] : memref<1x1xf32, #tpu.memory_space<vmem>>, vector<1x1xf32>
    %cst_15 = arith.constant dense<0.000000e+00> : vector<1xf32>
    %40 = vector.multi_reduction <add>, %38, %cst_15 [0] : vector<8x1xf32> to vector<1xf32>
    %41 = vector.shape_cast %40 : vector<1xf32> to vector<1x1xf32>
    %42 = arith.addf %39, %41 : vector<1x1xf32>
    %c0_16 = arith.constant 0 : index
    %c0_17 = arith.constant 0 : index
    %43 = vector.load %arg3[%c0_16, %c0_17] : memref<1x1xf32, #tpu.memory_space<vmem>>, vector<1x1xf32>
    tpu.vector_store %arg3[%c0_16, %c0_17], %42 {strides = array<i32>} : memref<1x1xf32, #tpu.memory_space<vmem>>, vector<1x1xf32>,
    %c0_i32_18 = arith.constant 0 : i32
    %44 = arith.cmpi eq, %arg0, %c0_i32_18 : i32
    %45 = arith.extui %44 : i1 to i32
    %c0_i32_19 = arith.constant 0 : i32
    %46 = arith.cmpi ne, %45, %c0_i32_19 : i32
    scf.if %46 {
      %c0_20 = arith.constant 0 : index
      %c0_21 = arith.constant 0 : index
      %47 = vector.load %arg3[%c0_20, %c0_21] : memref<1x1xf32, #tpu.memory_space<vmem>>, vector<1x1xf32>
      %cst_22 = arith.constant 1.250000e-01 : f32
      %48 = vector.broadcast %cst_22 : f32 to vector<1x1xf32>
      %49 = arith.mulf %47, %48 : vector<1x1xf32>
      %c0_23 = arith.constant 0 : index
      %c0_24 = arith.constant 0 : index
      %50 = vector.load %arg3[%c0_23, %c0_24] : memref<1x1xf32, #tpu.memory_space<vmem>>, vector<1x1xf32>
      tpu.vector_store %arg3[%c0_23, %c0_24], %49 {strides = array<i32>} : memref<1x1xf32, #tpu.memory_space<vmem>>, vector<1x1xf32>,
    } else {
    }
    return
  }
  func.func @transform_0(%arg0: i32) -> (i32, i32) {
    %c0_i32 = arith.constant 0 : i32
    %c0_i32_0 = arith.constant 0 : i32
    return %arg0, %c0_i32 : i32, i32
  }
  func.func @transform_1(%arg0: i32) -> (i32, i32) {
    %c0_i32 = arith.constant 0 : i32
    %c0_i32_0 = arith.constant 0 : i32
    return %arg0, %c0_i32 : i32, i32
  }
  func.func @transform_2(%arg0: i32) -> (i32, i32) {
    %c0_i32 = arith.constant 0 : i32
    %c0_i32_0 = arith.constant 0 : i32
    %c0_i32_1 = arith.constant 0 : i32
    return %c0_i32, %c0_i32_0 : i32, i32
  }
}

</mosaic_0001>

<llo_original>
// kernel: tpu_custom_call.1
$region0: #{tpu_custom_call.1}
  #allocation0 [shape = 'u32[]', space=smem, size = 0x4, offset = 0x4, fixed_abs, tag = 'smem constant byte address 0x4 - core index']
  #allocation1 [shape = 'u32[72,128]{1,0:T(1,128)}', space=vmem, size = 0x9000, scoped, tag = 'internal scratch']
  %s0 = inlined_call_operand.vmem [shape: f32[8,32], index: 0, kind: input, shape index: {}]
  %s1 = inlined_call_operand.vmem [shape: s32[8,1], index: 1, kind: input, shape index: {}]
  %s2 = inlined_call_operand.hbm [shape: f32[1,1], index: 2, kind: output, shape index: {}]
  %s3 = sld [smem:[#allocation0]]
  $region26: #{tpu_custom_call.1} parent=0
    _
  %s5 = ssub.s32 1, %s3
  %s6 = scalar_select 0, %s5, %s3
  $region1: #{tpu_custom_call.1} parent=0
    #allocation2 [shape = 'u8[512]{0}', space=vmem, size = 0x400, scoped, tag = 'output window, operand 0, single buffered']
    #allocation3 [shape = 's32[1]{0}', space=sflag, size = 0x4, scoped, tag = 'scoped memory for tpu_custom_call.1']
    %7 = vsyncpa [#allocation3], 0
    // Predicated region
    $region2: #{tpu_custom_call.1} parent=1 // pred_check
      _
    $region3: #{tpu_custom_call.1} parent=1 // pred_check_branch
      %9 = sbr.rel (0) target = $region5
    $region4: #{tpu_custom_call.1} parent=1 // pred_region
      _
    $region5: #{tpu_custom_call.1} parent=1 // pred_fallthru
      _
    // Predicated region
    $region6: #{tpu_custom_call.1} parent=1 // pred_check
      _
    $region7: #{tpu_custom_call.1} parent=1 // pred_check_branch
      %11 = sbr.rel (0) target = $region9
    $region8: #{tpu_custom_call.1} parent=1 // pred_region
      _
    $region9: #{tpu_custom_call.1} parent=1 // pred_fallthru
      _
    %v12 = vld [vmem:[%s0] sm:$0xff]
    %v13 = vld [vmem:[%s1] sm:$0xff]
    %vm14 = vcmask 261120
    %v15 = vsel %vm14, %v12, -inf
    %16 = vmax.xlane.f32.xlu0 %v15
    %v17 = vpop.xlane.xlu0 %16
    %v18 = vsub.f32 %v12, %v17
    %v19 = vmul.f32 %v18, 1.442695
    %v20 = vpow.pop %v19
    %v21 = vsel %vm14, %v20, 0.0
    %22 = vadd.xlane.f32.xlu0 %v21
    %v23 = vpop.xlane.xlu0 %22
    %v24 = vlog2.pop %v23
    %v25 = vmul.f32 %v24, 0.6931472
    %v26 = vadd.f32 %v17, %v25
    %v27 = vsel %vm14, %v12, 0.0
    %28 = vadd.xlane.f32.xlu0 %v27
    %v29 = vpop.xlane.xlu0 %28
    %v30 = vlaneseq
    %v31 = vand.u32 %v30, 127
    %32 = vset.pattern.permute.xlu0 0
    %33 = vperm.xlu0 %32, %v13
    %v34 = vpop.permute.xlu0 %33
    %vm35 = vcmp.eq.s32.totalorder %v31, %v34
    %v36 = vsel %vm35, %v12, 0.0
    %v37 = vsel %vm14, %v36, 0.0
    %38 = vadd.xlane.f32.xlu0 %v37
    %v39 = vpop.xlane.xlu0 %38
    %v40 = vmul.f32 %v26, 1.0032258
    %v41 = vmul.f32 %v29, 0.0032258064
    %v42 = vsub.f32 %v40, %v41
    %v43 = vmul.f32 %v39, 0.9
    %v44 = vsub.f32 %v42, %v43
    %p45 = scmp.eq.s32.totalorder 0, 0
    // Predicated region
    $region10: #{tpu_custom_call.1} parent=1 // pred_check
      %p46 = pneg %p45
    $region11: #{tpu_custom_call.1} parent=1 // pred_check_branch
      %48 = sbr.rel (%p46) target = $region13
    $region12: #{tpu_custom_call.1} parent=1 // pred_region
      %vm49 = vcmask 0
      %50 = vst.msk [vmem:[#allocation2] sm:$0x1] %vm49, 0.0
    $region13: #{tpu_custom_call.1} parent=1 // pred_fallthru
      _
    %s51 = smul.u32 0, 8
    %v52 = vlaneseq
    %v53 = vshrl.u32 %v52, 7
    %v54 = vstv %s51
    %v55 = vadd.s32 %v54, %v53
    %vm56 = vcmp.lt.s32.totalorder %v55, 8
    %v57 = vsel %vm56, %v44, 0.0
    %v58 = vld [vmem:[#allocation2] sm:$0x1]
    %v59 = vrot.slane %v57, 4
    %v60 = vadd.f32 %v57, %v59
    %v61 = vrot.slane %v60, 2
    %v62 = vadd.f32 %v60, %v61
    %v63 = vrot.slane %v62, 1
    %v64 = vadd.f32 %v62, %v63
    %v65 = vadd.f32 %v58, %v64
    %vm66 = vcmask 0
    %67 = vst.msk [vmem:[#allocation2] sm:$0x1] %vm66, %v65
    // Predicated region
    $region14: #{tpu_custom_call.1} parent=1 // pred_check
      %p68 = pneg %p45
    $region15: #{tpu_custom_call.1} parent=1 // pred_check_branch
      %70 = sbr.rel (%p68) target = $region17
    $region16: #{tpu_custom_call.1} parent=1 // pred_region
      %v71 = vld [vmem:[#allocation2] sm:$0x1]
      %v72 = vmul.f32 %v71, 0.125
      %73 = vst.msk [vmem:[#allocation2] sm:$0x1] %vm66, %v72
    $region17: #{tpu_custom_call.1} parent=1 // pred_fallthru
      _
    // Predicated region
    $region18: #{tpu_custom_call.1} parent=1 // pred_check
      _
    $region19: #{tpu_custom_call.1} parent=1 // pred_check_branch
      %75 = sbr.rel (0) target = $region21
    $region20: #{tpu_custom_call.1} parent=1 // pred_region
      %77 = vsyncadd [#allocation3], 0
      %s79 = sshll.u32 [#allocation2], 4
      %s80 = int_to_ptr.vmem [resolvable:$true] %s79
      %s81 = sshll.u32 %s2, 4
      %s82 = int_to_ptr.hbm [resolvable:$true] %s81
      %84 = dma.vmem_to_hbm [thread:$0]  %s80, 16, %s82, [#allocation3]
    $region21: #{tpu_custom_call.1} parent=1 // pred_fallthru
      _
    // Predicated region
    $region22: #{tpu_custom_call.1} parent=1 // pred_check
      _
    $region23: #{tpu_custom_call.1} parent=1 // pred_check_branch
      %86 = sbr.rel (0) target = $region25
    $region24: #{tpu_custom_call.1} parent=1 // pred_region
      %88 = dma.done [#allocation3], 16
    $region25: #{tpu_custom_call.1} parent=1 // pred_fallthru
      _
    %89 = vsyncpa [#allocation3], 1

</llo_original>
